<compile_context>
chip_gen: v7x
topology: tpu7x:2x2x1
jax: 0.10.0
libtpu: 0.0.40
codegen_flags: <defaults>
</compile_context>

<pallas_src>
import functools

import jax
import jax.numpy as jnp
from jax import lax
from jax.experimental import pallas as pl
from jax.experimental.pallas import tpu as pltpu

LANES = 128
CHUNK_ROWS = 512                      # inner slab: 512x128 f32 = 256 KiB temporaries
MAX_ACC_SUBLANES = 32                 # accumulator slab height (4 independent chains)
TARGET_INPUT_VMEM = 16 * 1024 * 1024  # budget for both inputs, double-buffered
MAX_ROW_TILE = 16384                  # absolute cap (bounds unrolled chunk count)
_NEG_FILL = -3.0e4                    # sigmoid(-3e4) == 0.0 exactly (fits f16/bf16)


def _sublane_multiple(dtype):
    # Minimum second-to-last block dim per dtype (sub-32-bit packs along sublanes).
    return {4: 8, 2: 16, 1: 32}.get(jnp.dtype(dtype).itemsize, 8)


def _round_up(x, m):
    return ((x + m - 1) // m) * m


@functools.lru_cache(maxsize=1)
def _num_tensorcores():
    """Best-effort TensorCore count per device; partition split only helps there."""
    try:
        kind = jax.devices()[0].device_kind.lower()
    except Exception:
        return 1
    # v4 / v5p are megacore; v7x has 2 TensorCores per chip.  v5e / v6e: 1 TC —
    # a 2-way partition there only adds overhang / extra-init overhead.
    if any(tag in kind for tag in ("v4", "v5p", "v7", "tpu7")):
        return 2
    return 1


def _sigmoid_f32(x):
    # tanh-form logistic: a single EUP push per element (vs exp + reciprocal).
    return 0.5 * (jnp.tanh(0.5 * x) + 1.0)


def _make_dice_kernel(row_tile, acc_sub, rows, nblocks, num_part, steps_per_part):
    """Builds the partial-sum kernel for a fixed (static) tiling."""
    ragged_last = (rows % row_tile) != 0
    # First logical block index whose tile reaches past `rows` valid rows.
    mask_start = (nblocks - 1) if ragged_last else nblocks
    max_blk = num_part * steps_per_part - 1
    has_masked_steps = max_blk >= mask_start
    chunk = min(CHUNK_ROWS, row_tile)
    chunk_starts = tuple(range(0, row_tile, chunk))

    def kernel(p_ref, m_ref, tot_ref, int_ref):
        part = pl.program_id(0)   # "parallel" partition axis
        step = pl.program_id(1)   # "arbitrary" reduction step within partition

        @pl.when(step == 0)
        def _init():
            tot_ref[...] = jnp.zeros_like(tot_ref)
            int_ref[...] = jnp.zeros_like(int_ref)

        # Logical (unclamped) block index; the index_map clamps the DMA, so
        # out-of-range steps just re-read the last block and get fully masked.
        blk = part * steps_per_part + step

        def tile_sums(masked):
            # Chunked streaming over the tile: no full-tile f32 intermediates,
            # per-chunk reshape to (-1, acc_sub, 128) keeps acc_sub//8
            # independent VPU add chains per accumulator.
            acc_t = jnp.zeros((acc_sub, LANES), jnp.float32)
            acc_i = jnp.zeros((acc_sub, LANES), jnp.float32)
            for start in chunk_starts:
                size = min(chunk, row_tile - start)
                ps = _sigmoid_f32(p_ref[start:start + size, :].astype(jnp.float32))
                mv = m_ref[start:start + size, :].astype(jnp.float32)
                if masked:
                    row_ids = (blk * row_tile + start) + lax.broadcasted_iota(
                        jnp.int32, (size, LANES), 0)
                    valid = row_ids < rows
                    # Select (not multiply-by-mask): also kills NaN/Inf from
                    # sigmoid of out-of-bounds garbage.
                    ps = jnp.where(valid, ps, 0.0)
                    mv = jnp.where(valid, mv, 0.0)
                acc_t = acc_t + jnp.sum((ps + mv).reshape(-1, acc_sub, LANES), axis=0)
                acc_i = acc_i + jnp.sum((ps * mv).reshape(-1, acc_sub, LANES), axis=0)
            tot_ref[...] += acc_t
            int_ref[...] += acc_i

        if not has_masked_steps:
            tile_sums(masked=False)
        else:
            @pl.when(blk < mask_start)
            def _interior():          # fast path: no masking work at all
                tile_sums(masked=False)

            @pl.when(blk >= mask_start)
            def _boundary():          # ragged tail / partition-overhang blocks
                tile_sums(masked=True)

    return kernel


def _dice_partial_sums(p2d, m2d, row_tile, acc_sub, rows, nblocks, num_part,
                       steps_per_part):
    kernel = _make_dice_kernel(row_tile, acc_sub, rows, nblocks, num_part,
                               steps_per_part)

    def in_map(part, step):
        # Clamp: overhang steps re-read the last block; they are fully masked.
        return (jnp.minimum(part * steps_per_part + step, nblocks - 1), 0)

    def out_map(part, step):
        return (part, 0)

    acc_rows = num_part * acc_sub
    tot, inter = pl.pallas_call(
        kernel,
        out_shape=(
            jax.ShapeDtypeStruct((acc_rows, LANES), jnp.float32),
            jax.ShapeDtypeStruct((acc_rows, LANES), jnp.float32),
        ),
        grid_spec=pltpu.PrefetchScalarGridSpec(
            num_scalar_prefetch=0,
            grid=(num_part, steps_per_part),
            in_specs=[
                pl.BlockSpec((row_tile, LANES), in_map),
                pl.BlockSpec((row_tile, LANES), in_map),
            ],
            out_specs=[
                pl.BlockSpec((acc_sub, LANES), out_map),
                pl.BlockSpec((acc_sub, LANES), out_map),
            ],
        ),
        compiler_params=pltpu.CompilerParams(
            # TODO(synk): on v7x validate with xprof that "parallel" actually
            # shards the partition axis across both TensorCores; if it does
            # not, switch that axis to pltpu.CORE_PARALLEL.
            dimension_semantics=("parallel", "arbitrary"),
            # Double-buffered inputs <= 16 MiB + chunk-sized temporaries; well
            # below every generation's physical VMEM (64 MiB on v7x).
            vmem_limit_bytes=40 * 1024 * 1024,
        ),
    )(p2d, m2d)
    return tot, inter


@functools.partial(jax.jit, static_argnames=("smooth",))
def dice_loss(predict_flat, mask_flat, smooth=0.001):
    """DiceLoss.forward: sigmoid(predict), global dice over all elements."""
    # Native dtypes throughout: the kernel casts per chunk, so bf16 logits or
    # narrow (int8/bool) masks from upstream directly reduce HBM traffic.
    p = predict_flat.reshape(-1)
    m = mask_flat.reshape(-1)
    n = p.shape[0]

    sub = max(_sublane_multiple(p.dtype), _sublane_multiple(m.dtype))
    rows = max(sub, _round_up(pl.cdiv(n, LANES), sub))
    padded = rows * LANES
    if padded != n:
        # Rare path (n not a multiple of sub*128): tiny pad; sigmoid(pad) == 0
        # and mask pad == 0, so padded elements contribute nothing.
        p = jnp.pad(p, (0, padded - n), constant_values=_NEG_FILL)
        m = jnp.pad(m, (0, padded - n), constant_values=0)
    # Row-major reshape to a lane-dense (rows, 128) view — free (no HBM copy)
    # in the aligned common case.
    p2d = p.reshape(rows, LANES)
    m2d = m.reshape(rows, LANES)

    # Tile sized in bytes (~4 MiB / input buffer): big enough to amortize the
    # ~0.35 us per-grid-step overhead on v5e/v6e/v7x; the chunked kernel body
    # keeps temporaries out of VMEM so the tile is bounded only by the
    # double-buffered input budget.
    itemsz = jnp.dtype(p.dtype).itemsize + jnp.dtype(m.dtype).itemsize
    cap_rows = min(MAX_ROW_TILE, TARGET_INPUT_VMEM // (2 * LANES * itemsz))
    if cap_rows >= CHUNK_ROWS:
        cap_rows = (cap_rows // CHUNK_ROWS) * CHUNK_ROWS
    else:
        cap_rows = max(sub, (cap_rows // sub) * sub)
    row_tile = min(cap_rows, rows)

    nblocks = pl.cdiv(rows, row_tile)
    num_part = min(_num_tensorcores(), nblocks)
    steps_per_part = pl.cdiv(nblocks, num_part)

    # Widest accumulator slab that divides the tile: up to (32,128) -> 4
    # independent add chains.
    if row_tile % MAX_ACC_SUBLANES == 0:
        acc_sub = MAX_ACC_SUBLANES
    elif row_tile % 16 == 0:
        acc_sub = 16
    else:
        acc_sub = 8

    tot, inter = _dice_partial_sums(
        p2d, m2d, row_tile, acc_sub, rows, nblocks, num_part, steps_per_part)

    total = jnp.sum(tot)
    intersection = jnp.sum(inter)
    union = total - intersection
    dice = (2.0 * intersection + smooth) / (union + smooth)
    return jnp.clip(1.0 - dice, 0.0, 1.0)


def _reference_dice_loss(predict_flat, mask_flat, smooth=0.001):
    p = jax.nn.sigmoid(jnp.ravel(predict_flat).astype(jnp.float32))
    m = jnp.ravel(mask_flat).astype(jnp.float32)
    total = jnp.sum(p + m)
    inter = jnp.sum(p * m)
    union = total - inter
    dice = (2.0 * inter + smooth) / (union + smooth)
    return jnp.clip(1.0 - dice, 0.0, 1.0)


if __name__ == "__main__":
    key = jax.random.PRNGKey(0)

    # Primary small case: NCHW logits + binary mask, as the loss would see them.
    key, k1, k2 = jax.random.split(key, 3)
    predict = jax.random.normal(k1, (2, 4, 16, 16), dtype=jnp.float32)
    mask = (jax.random.uniform(k2, (2, 4, 16, 16)) > 0.5).astype(jnp.float32)
    out = dice_loss(predict, mask)
    jax.block_until_ready(out)
    ref = _reference_dice_loss(predict, mask)
    assert jnp.allclose(out, ref, atol=1e-5, rtol=1e-5), (out, ref)

    # Extra coverage:
    #  (a) single-block, multi-chunk body            -> (2, 4, 192, 192)
    #  (b) multi-block, no ragged tail               -> (2, 4, 512, 512)
    #  (c) multi-block + ragged-tail masking         -> (1, 1, 1040, 1024)
    #  (d) odd block count (overhang path on 2-TC)   -> (1, 3, 1024, 1024)
    #  (e) tiny unaligned input (pad path)           -> (1, 1, 5, 7)
    #  (f) native bf16 logits (no wrapper upcast)    -> (2, 4, 16, 16) bf16
    extra_cases = [
        ((2, 4, 192, 192), jnp.float32),
        ((2, 4, 512, 512), jnp.float32),
        ((1, 1, 1040, 1024), jnp.float32),
        ((1, 3, 1024, 1024), jnp.float32),
        ((1, 1, 5, 7), jnp.float32),
        ((2, 4, 16, 16), jnp.bfloat16),
    ]
    for shape, pdtype in extra_cases:
        key, ka, kb = jax.random.split(key, 3)
        pr = jax.random.normal(ka, shape, dtype=jnp.float32).astype(pdtype)
        mk = (jax.random.uniform(kb, shape) > 0.5).astype(jnp.float32)
        o = dice_loss(pr, mk)
        jax.block_until_ready(o)
        r = _reference_dice_loss(pr, mk)
        assert jnp.allclose(o, r, atol=1e-4, rtol=1e-4), (shape, pdtype, o, r)

    print("KERNEL_OK")
</pallas_src>

<mosaic_0001>
module attributes {stable_mosaic.version = 11 : i64} {
  func.func @kernel(%arg0: i32, %arg1: i32, %arg2: memref<16x128xf32, #tpu.memory_space<vmem>>, %arg3: memref<16x128xf32, #tpu.memory_space<vmem>>, %arg4: memref<16x128xf32, #tpu.memory_space<vmem>>, %arg5: memref<16x128xf32, #tpu.memory_space<vmem>>) attributes {dimension_semantics = [#tpu.dimension_semantics<parallel>, #tpu.dimension_semantics<arbitrary>], iteration_bounds = array<i64: 1, 1>, scalar_prefetch = 0 : i64, scratch_operands = 0 : i64, tpu.core_type = #tpu.core_type<tc>, window_params = [{transform_indices = @transform_0, window_bounds = array<i64: 16, 128>}, {transform_indices = @transform_1, window_bounds = array<i64: 16, 128>}, {transform_indices = @transform_2, window_bounds = array<i64: 16, 128>}, {transform_indices = @transform_3, window_bounds = array<i64: 16, 128>}]} {
    %c0_i32 = arith.constant 0 : i32
    %0 = arith.cmpi eq, %arg1, %c0_i32 : i32
    %1 = arith.extui %0 : i1 to i32
    %c0_i32_0 = arith.constant 0 : i32
    %2 = arith.cmpi ne, %1, %c0_i32_0 : i32
    scf.if %2 {
      %cst_18 = arith.constant 0.000000e+00 : f32
      %28 = vector.broadcast %cst_18 : f32 to vector<16x128xf32>
      %c0_19 = arith.constant 0 : index
      %c0_20 = arith.constant 0 : index
      %29 = vector.load %arg4[%c0_19, %c0_20] : memref<16x128xf32, #tpu.memory_space<vmem>>, vector<16x128xf32>
      tpu.vector_store %arg4[%c0_19, %c0_20], %28 {strides = array<i32>} : memref<16x128xf32, #tpu.memory_space<vmem>>, vector<16x128xf32>,
      %cst_21 = arith.constant 0.000000e+00 : f32
      %30 = vector.broadcast %cst_21 : f32 to vector<16x128xf32>
      %c0_22 = arith.constant 0 : index
      %c0_23 = arith.constant 0 : index
      %31 = vector.load %arg5[%c0_22, %c0_23] : memref<16x128xf32, #tpu.memory_space<vmem>>, vector<16x128xf32>
      tpu.vector_store %arg5[%c0_22, %c0_23], %30 {strides = array<i32>} : memref<16x128xf32, #tpu.memory_space<vmem>>, vector<16x128xf32>,
    } else {
    }
    %cst = arith.constant 0.000000e+00 : f32
    %3 = vector.broadcast %cst : f32 to vector<16x128xf32>
    %cst_1 = arith.constant 0.000000e+00 : f32
    %4 = vector.broadcast %cst_1 : f32 to vector<16x128xf32>
    %c0 = arith.constant 0 : index
    %c0_2 = arith.constant 0 : index
    %5 = vector.load %arg2[%c0, %c0_2] : memref<16x128xf32, #tpu.memory_space<vmem>>, vector<16x128xf32>
    %cst_3 = arith.constant 5.000000e-01 : f32
    %6 = vector.broadcast %cst_3 : f32 to vector<16x128xf32>
    %7 = arith.mulf %6, %5 : vector<16x128xf32>
    %8 = math.tanh %7 : vector<16x128xf32>
    %cst_4 = arith.constant 1.000000e+00 : f32
    %9 = vector.broadcast %cst_4 : f32 to vector<16x128xf32>
    %10 = arith.addf %8, %9 : vector<16x128xf32>
    %cst_5 = arith.constant 5.000000e-01 : f32
    %11 = vector.broadcast %cst_5 : f32 to vector<16x128xf32>
    %12 = arith.mulf %11, %10 : vector<16x128xf32>
    %c0_6 = arith.constant 0 : index
    %c0_7 = arith.constant 0 : index
    %13 = vector.load %arg3[%c0_6, %c0_7] : memref<16x128xf32, #tpu.memory_space<vmem>>, vector<16x128xf32>
    %14 = arith.addf %12, %13 : vector<16x128xf32>
    %15 = vector.shape_cast %14 : vector<16x128xf32> to vector<1x16x128xf32>
    %cst_8 = arith.constant dense<0.000000e+00> : vector<16x128xf32>
    %16 = vector.multi_reduction <add>, %15, %cst_8 [0] : vector<1x16x128xf32> to vector<16x128xf32>
    %17 = arith.addf %3, %16 : vector<16x128xf32>
    %18 = arith.mulf %12, %13 : vector<16x128xf32>
    %19 = vector.shape_cast %18 : vector<16x128xf32> to vector<1x16x128xf32>
    %cst_9 = arith.constant dense<0.000000e+00> : vector<16x128xf32>
    %20 = vector.multi_reduction <add>, %19, %cst_9 [0] : vector<1x16x128xf32> to vector<16x128xf32>
    %21 = arith.addf %4, %20 : vector<16x128xf32>
    %c0_10 = arith.constant 0 : index
    %c0_11 = arith.constant 0 : index
    %22 = vector.load %arg4[%c0_10, %c0_11] : memref<16x128xf32, #tpu.memory_space<vmem>>, vector<16x128xf32>
    %23 = arith.addf %22, %17 : vector<16x128xf32>
    %c0_12 = arith.constant 0 : index
    %c0_13 = arith.constant 0 : index
    %24 = vector.load %arg4[%c0_12, %c0_13] : memref<16x128xf32, #tpu.memory_space<vmem>>, vector<16x128xf32>
    tpu.vector_store %arg4[%c0_12, %c0_13], %23 {strides = array<i32>} : memref<16x128xf32, #tpu.memory_space<vmem>>, vector<16x128xf32>,
    %c0_14 = arith.constant 0 : index
    %c0_15 = arith.constant 0 : index
    %25 = vector.load %arg5[%c0_14, %c0_15] : memref<16x128xf32, #tpu.memory_space<vmem>>, vector<16x128xf32>
    %26 = arith.addf %25, %21 : vector<16x128xf32>
    %c0_16 = arith.constant 0 : index
    %c0_17 = arith.constant 0 : index
    %27 = vector.load %arg5[%c0_16, %c0_17] : memref<16x128xf32, #tpu.memory_space<vmem>>, vector<16x128xf32>
    tpu.vector_store %arg5[%c0_16, %c0_17], %26 {strides = array<i32>} : memref<16x128xf32, #tpu.memory_space<vmem>>, vector<16x128xf32>,
    return
  }
  func.func @transform_0(%arg0: i32, %arg1: i32) -> (i32, i32) {
    %c1_i32 = arith.constant 1 : i32
    %0 = arith.muli %arg0, %c1_i32 : i32
    %1 = arith.addi %0, %arg1 : i32
    %c0_i32 = arith.constant 0 : i32
    %2 = arith.minsi %1, %c0_i32 : i32
    %c0_i32_0 = arith.constant 0 : i32
    %c0_i32_1 = arith.constant 0 : i32
    return %2, %c0_i32_0 : i32, i32
  }
  func.func @transform_1(%arg0: i32, %arg1: i32) -> (i32, i32) {
    %c1_i32 = arith.constant 1 : i32
    %0 = arith.muli %arg0, %c1_i32 : i32
    %1 = arith.addi %0, %arg1 : i32
    %c0_i32 = arith.constant 0 : i32
    %2 = arith.minsi %1, %c0_i32 : i32
    %c0_i32_0 = arith.constant 0 : i32
    %c0_i32_1 = arith.constant 0 : i32
    return %2, %c0_i32_0 : i32, i32
  }
  func.func @transform_2(%arg0: i32, %arg1: i32) -> (i32, i32) {
    %c0_i32 = arith.constant 0 : i32
    %c0_i32_0 = arith.constant 0 : i32
    return %arg0, %c0_i32 : i32, i32
  }
  func.func @transform_3(%arg0: i32, %arg1: i32) -> (i32, i32) {
    %c0_i32 = arith.constant 0 : i32
    %c0_i32_0 = arith.constant 0 : i32
    return %arg0, %c0_i32 : i32, i32
  }
}

</mosaic_0001>

<llo_original>
// kernel: dice_loss.1
$region0: #{dice_loss.1}
  #allocation0 [shape = 'u32[]', space=smem, size = 0x4, offset = 0x4, fixed_abs, tag = 'smem constant byte address 0x4 - core index']
  #allocation1 [shape = 'u32[144,128]{1,0:T(1,128)}', space=vmem, size = 0x12000, scoped, tag = 'internal scratch']
  %s0 = inlined_call_operand.vmem [shape: f32[16,128], index: 0, kind: input, shape index: {}]
  %s1 = inlined_call_operand.vmem [shape: f32[16,128], index: 1, kind: input, shape index: {}]
  %s2 = inlined_call_operand.vmem [shape: f32[16,128], index: 2, kind: output, shape index: {0}]
  %s3 = inlined_call_operand.vmem [shape: f32[16,128], index: 3, kind: output, shape index: {1}]
  %4 = xla_tuple %s2, %s3
  %s5 = sld [smem:[#allocation0]]
  $region30: #{dice_loss.1} parent=0
    _
  %s7 = ssub.s32 1, %s5
  %s8 = scalar_select 0, %s7, %s5
  // Predicated region
  $region2: #{dice_loss.1} parent=0 // pred_check
    _
  $region3: #{dice_loss.1} parent=0 // pred_check_branch
    %10 = sbr.rel (0) target = $region5
  $region4: #{dice_loss.1} parent=0 // pred_region
    %s11 = sadd.s32 0, 0
    %p12 = scmp.lt.s32.totalorder %s11, 0
    %s13 = scalar_select %p12, %s11, 0
    %s14 = smul.u32 2, %s13
    %p15 = scmp.lt.s32.totalorder %s14, 1
    %s16 = scalar_select %p15, %s14, 1
    %s17 = smul.addr %s16, 8
    %s18 = scalar_lea.vmem %s0, %s17
    %s19 = sadd.s32 0, 0
    %p20 = scmp.lt.s32.totalorder %s19, 0
    %s21 = scalar_select %p20, %s19, 0
    %s22 = smul.u32 2, %s21
  $region5: #{dice_loss.1} parent=0 // pred_fallthru
    _
  // Predicated region
  $region6: #{dice_loss.1} parent=0 // pred_check
    _
  $region7: #{dice_loss.1} parent=0 // pred_check_branch
    %24 = sbr.rel (0) target = $region9
  $region8: #{dice_loss.1} parent=0 // pred_region
    %s25 = sadd.s32 0, 0
    %p26 = scmp.lt.s32.totalorder %s25, 0
    %s27 = scalar_select %p26, %s25, 0
    %s28 = smul.u32 2, %s27
    %p29 = scmp.lt.s32.totalorder %s28, 1
    %s30 = scalar_select %p29, %s28, 1
    %s31 = smul.addr %s30, 8
    %s32 = scalar_lea.vmem %s1, %s31
    %s33 = sadd.s32 0, 0
    %p34 = scmp.lt.s32.totalorder %s33, 0
    %s35 = scalar_select %p34, %s33, 0
    %s36 = smul.u32 2, %s35
  $region9: #{dice_loss.1} parent=0 // pred_fallthru
    _
  %s37 = sadd.s32 0, 0
  %p38 = scmp.lt.s32.totalorder %s37, 0
  %s39 = scalar_select %p38, %s37, 0
  %s40 = smul.u32 2, %s39
  %p41 = scmp.lt.s32.totalorder %s40, 1
  %s42 = scalar_select %p41, %s40, 1
  %s43 = smul.addr %s42, 8
  %s44 = scalar_lea.vmem %s0, %s43
  %s45 = sadd.s32 0, 0
  %p46 = scmp.lt.s32.totalorder %s45, 0
  %s47 = scalar_select %p46, %s45, 0
  %s48 = smul.u32 2, %s47
  %p49 = scmp.lt.s32.totalorder %s48, 1
  %s50 = scalar_select %p49, %s48, 1
  %s51 = smul.addr %s50, 8
  %s52 = scalar_lea.vmem %s1, %s51
  %s53 = sadd.s32 0, 0
  %p54 = scmp.lt.s32.totalorder %s53, 0
  %s55 = scalar_select %p54, %s53, 0
  %s56 = smul.u32 2, %s55
  %p57 = scmp.lt.s32.totalorder %s56, 1
  %s58 = scalar_select %p57, %s56, 1
  %s59 = smul.addr %s58, 8
  %s60 = scalar_lea.vmem %s0, %s59
  %s61 = sadd.s32 0, 0
  %p62 = scmp.lt.s32.totalorder %s61, 0
  %s63 = scalar_select %p62, %s61, 0
  %s64 = smul.u32 2, %s63
  %s65 = sadd.s32 0, 0
  %p66 = scmp.lt.s32.totalorder %s65, 0
  %s67 = scalar_select %p66, %s65, 0
  %s68 = smul.u32 2, %s67
  %p69 = scmp.lt.s32.totalorder %s68, 1
  %s70 = scalar_select %p69, %s68, 1
  %s71 = smul.addr %s70, 8
  %s72 = scalar_lea.vmem %s1, %s71
  %s73 = sadd.s32 0, 0
  %p74 = scmp.lt.s32.totalorder %s73, 0
  %s75 = scalar_select %p74, %s73, 0
  %s76 = smul.u32 2, %s75
  %p77 = scmp.eq.s32.totalorder 0, 0
  // Predicated region
  $region10: #{dice_loss.1} parent=0 // pred_check
    %p78 = pneg %p77
  $region11: #{dice_loss.1} parent=0 // pred_check_branch
    %80 = sbr.rel (%p78) target = $region13
  $region12: #{dice_loss.1} parent=0 // pred_region
    %81 = vst [vmem:[%s2] sm:$0xff] 0.0
    %82 = vst [vmem:[%s2 + $0x8] sm:$0xff] 0.0
    %83 = vst [vmem:[%s3] sm:$0xff] 0.0
    %84 = vst [vmem:[%s3 + $0x8] sm:$0xff] 0.0
  $region13: #{dice_loss.1} parent=0 // pred_fallthru
    _
  %v85 = vld [vmem:[%s60] sm:$0xff]
  %v86 = vld [vmem:[%s60 + $0x8] sm:$0xff]
  %v87 = vmul.f32 %v85, 0.5
  %v88 = vmul.f32 %v86, 0.5
  %v89 = vtanh.pop %v87
  %v90 = vtanh.pop %v88
  %v91 = vadd.f32 %v89, 1.0
  %v92 = vadd.f32 %v90, 1.0
  %v93 = vmul.f32 %v91, 0.5
  %v94 = vmul.f32 %v92, 0.5
  %v95 = vld [vmem:[%s72] sm:$0xff]
  %v96 = vld [vmem:[%s72 + $0x8] sm:$0xff]
  %v97 = vadd.f32 %v93, %v95
  %v98 = vadd.f32 %v94, %v96
  %v99 = vadd.f32 %v97, 0.0
  %v100 = vadd.f32 %v98, 0.0
  %v101 = vadd.f32 %v99, 0.0
  %v102 = vadd.f32 %v100, 0.0
  %v103 = vmul.f32 %v93, %v95
  %v104 = vmul.f32 %v94, %v96
  %v105 = vadd.f32 %v103, 0.0
  %v106 = vadd.f32 %v104, 0.0
  %v107 = vadd.f32 %v105, 0.0
  %v108 = vadd.f32 %v106, 0.0
  %v109 = vld [vmem:[%s2] sm:$0xff]
  %v110 = vld [vmem:[%s2 + $0x8] sm:$0xff]
  %v111 = vadd.f32 %v109, %v101
  %v112 = vadd.f32 %v110, %v102
  %113 = vst [vmem:[%s2] sm:$0xff] %v111
  %114 = vst [vmem:[%s2 + $0x8] sm:$0xff] %v112
  %v115 = vld [vmem:[%s3] sm:$0xff]
  %v116 = vld [vmem:[%s3 + $0x8] sm:$0xff]
  %v117 = vadd.f32 %v115, %v107
  %v118 = vadd.f32 %v116, %v108
  %119 = vst [vmem:[%s3] sm:$0xff] %v117
  %120 = vst [vmem:[%s3 + $0x8] sm:$0xff] %v118
  // Predicated region
  $region14: #{dice_loss.1} parent=0 // pred_check
    _
  $region15: #{dice_loss.1} parent=0 // pred_check_branch
    %122 = sbr.rel (0) target = $region17
  $region16: #{dice_loss.1} parent=0 // pred_region
    _
  $region17: #{dice_loss.1} parent=0 // pred_fallthru
    _
  // Predicated region
  $region18: #{dice_loss.1} parent=0 // pred_check
    _
  $region19: #{dice_loss.1} parent=0 // pred_check_branch
    %124 = sbr.rel (0) target = $region21
  $region20: #{dice_loss.1} parent=0 // pred_region
    _
  $region21: #{dice_loss.1} parent=0 // pred_fallthru
    _
  // Predicated region
  $region22: #{dice_loss.1} parent=0 // pred_check
    _
  $region23: #{dice_loss.1} parent=0 // pred_check_branch
    %126 = sbr.rel (0) target = $region25
  $region24: #{dice_loss.1} parent=0 // pred_region
    _
  $region25: #{dice_loss.1} parent=0 // pred_fallthru
    _
  // Predicated region
  $region26: #{dice_loss.1} parent=0 // pred_check
    _
  $region27: #{dice_loss.1} parent=0 // pred_check_branch
    %128 = sbr.rel (0) target = $region29
  $region28: #{dice_loss.1} parent=0 // pred_region
    _
  $region29: #{dice_loss.1} parent=0 // pred_fallthru
    _

</llo_original>
